<compile_context>
chip_gen: v5e
topology: v5e:2x2
jax: 0.10.0
libtpu: 0.0.40
codegen_flags: <defaults>
</compile_context>

<pallas_src>
import functools
import math

import jax
import jax.numpy as jnp
import numpy as np
from jax import lax
from jax.experimental import pallas as pl
from jax.experimental.pallas import tpu as pltpu


# ---------------------------------------------------------------------------
# Tiled linear kernel:  y = x @ w^T + b     (x: (M, K), w: (Nout, K), b: (Nout,))
# ---------------------------------------------------------------------------
def _linear_kernel(x_ref, w_ref, b_ref, o_ref, acc_ref):
    k = pl.program_id(2)

    @pl.when(k == 0)
    def _():
        acc_ref[...] = jnp.zeros_like(acc_ref)

    # Contract the last dim of both operands -> weight consumed untransposed.
    acc_ref[...] += lax.dot_general(
        x_ref[...], w_ref[...],
        dimension_numbers=(((1,), (1,)), ((), ())),
        preferred_element_type=jnp.float32,
    )

    @pl.when(k == pl.num_programs(2) - 1)
    def _():
        o_ref[...] = (acc_ref[...] + b_ref[...]).astype(o_ref.dtype)


def _pick_tile(dim, candidates):
    for c in candidates:
        if dim % c == 0:
            return c
    return dim  # fall back to the whole (untiled) dimension


def linear(x, w, b, out_dtype=jnp.float32):
    """y = x @ w.T + b.   x: (M, K) , w: (Nout, K), b: (Nout,)  ->  (M, Nout)."""
    M, K = x.shape
    Nout = w.shape[0]

    xb = x.astype(jnp.bfloat16)              # bf16 MXU operands, f32 accumulation
    wb = w.astype(jnp.bfloat16)
    b2 = b.astype(jnp.float32).reshape(1, Nout)

    tm = _pick_tile(M, (256, 128, 64, 32, 16, 8))
    tn = _pick_tile(Nout, (256, 128))
    tk = _pick_tile(K, (512, 256, 128))
    grid = (M // tm, Nout // tn, K // tk)

    cost = pl.CostEstimate(
        flops=2 * M * Nout * K,
        transcendentals=0,
        bytes_accessed=(M * K * 2 + Nout * K * 2
                        + M * Nout * jnp.dtype(out_dtype).itemsize + Nout * 4),
    )

    return pl.pallas_call(
        _linear_kernel,
        out_shape=jax.ShapeDtypeStruct((M, Nout), out_dtype),
        grid=grid,
        in_specs=[
            pl.BlockSpec((tm, tk), lambda i, j, k: (i, k)),
            pl.BlockSpec((tn, tk), lambda i, j, k: (j, k)),
            pl.BlockSpec((1, tn), lambda i, j, k: (0, j)),
        ],
        out_specs=pl.BlockSpec((tm, tn), lambda i, j, k: (i, j)),
        scratch_shapes=[pltpu.VMEM((tm, tn), jnp.float32)],
        compiler_params=pltpu.CompilerParams(
            dimension_semantics=("parallel", "parallel", "arbitrary"),
        ),
        cost_estimate=cost,
    )(xb, wb, b2)


# ---------------------------------------------------------------------------
# Attention kernel: all heads of one batch element per grid step.
# ---------------------------------------------------------------------------
def _attn_kernel(q_ref, k_ref, v_ref, o_ref, w_ref, *, scale, inv_heads):
    q = q_ref[0] * scale                    # (H, L, Dh) bf16 -- scale folded into Q
    k = k_ref[0]                            # (H, S, Dh) bf16
    v = v_ref[0]                            # (H, S, Dh) bf16

    # scores / softmax in f32 (MXU accumulation in f32)
    s = jnp.einsum("hqd,hkd->hqk", q, k, preferred_element_type=jnp.float32)  # (H, L, S)
    m = jnp.max(s, axis=-1, keepdims=True)
    e = jnp.exp(s - m)
    denom = jnp.sum(e, axis=-1, keepdims=True)
    p = e * pl.reciprocal(denom, approx=True)                                 # (H, L, S)

    ctx = jnp.einsum("hqk,hkd->hqd", p.astype(v.dtype), v,
                     preferred_element_type=jnp.float32)                      # (H, L, Dh)
    o_ref[0] = ctx.astype(o_ref.dtype)
    # head-averaged attention weights computed in-kernel: only (L, S) per batch to HBM
    w_ref[0] = jnp.sum(p, axis=0) * inv_heads


def multihead_attention(query, key, value, in_proj_w, in_proj_b,
                        out_proj_w, out_proj_b, num_heads):
    """Semantics of nn.MultiheadAttention.forward(q, k, v) with default flags.

    query: (L, N, E); key/value: (S, N, E) (batch_first=False layout).
    Returns (attn_output (L, N, E) f32, attn_weights (N, L, S) f32 averaged over heads).
    """
    L, N, E = query.shape
    S = key.shape[0]
    H = num_heads
    Dh = E // H
    scale = 1.0 / math.sqrt(Dh)

    # ---- in-projections (fused where inputs alias, mirroring PyTorch's fast paths) ----
    if query is key and key is value:
        qkv = linear(query.reshape(L * N, E), in_proj_w, in_proj_b,
                     out_dtype=jnp.bfloat16)                     # single (M, 3E) matmul
        q, k, v = qkv[:, :E], qkv[:, E:2 * E], qkv[:, 2 * E:]
    elif key is value:
        q = linear(query.reshape(L * N, E), in_proj_w[:E], in_proj_b[:E],
                   out_dtype=jnp.bfloat16)
        kv = linear(key.reshape(S * N, E), in_proj_w[E:], in_proj_b[E:],
                    out_dtype=jnp.bfloat16)                      # fused K/V projection
        k, v = kv[:, :E], kv[:, E:]
    else:
        q = linear(query.reshape(L * N, E), in_proj_w[:E], in_proj_b[:E],
                   out_dtype=jnp.bfloat16)
        k = linear(key.reshape(S * N, E), in_proj_w[E:2 * E], in_proj_b[E:2 * E],
                   out_dtype=jnp.bfloat16)
        v = linear(value.reshape(S * N, E), in_proj_w[2 * E:], in_proj_b[2 * E:],
                   out_dtype=jnp.bfloat16)

    # ---- split heads: (L, N, E) -> (N, H, L, Dh) ----
    # TODO(synk): split/merge still via XLA transposes; folding them into BlockSpec index_maps needs Dh % 128 == 0 (true at the real Dh=1024, not at this scaled-down test size).
    qh = q.reshape(L, N, H, Dh).transpose(1, 2, 0, 3)
    kh = k.reshape(S, N, H, Dh).transpose(1, 2, 0, 3)
    vh = v.reshape(S, N, H, Dh).transpose(1, 2, 0, 3)

    cost = pl.CostEstimate(
        flops=4 * N * H * L * S * Dh,
        transcendentals=N * H * L * S,
        bytes_accessed=(2 * (N * H * L * Dh + 2 * N * H * S * Dh)
                        + 2 * N * H * L * Dh + 4 * N * L * S),
    )

    ctx, attn_w = pl.pallas_call(
        functools.partial(_attn_kernel, scale=scale, inv_heads=1.0 / H),
        out_shape=(
            jax.ShapeDtypeStruct((N, H, L, Dh), jnp.bfloat16),
            jax.ShapeDtypeStruct((N, L, S), jnp.float32),
        ),
        grid=(N,),
        in_specs=[
            pl.BlockSpec((1, H, L, Dh), lambda b: (b, 0, 0, 0)),
            pl.BlockSpec((1, H, S, Dh), lambda b: (b, 0, 0, 0)),
            pl.BlockSpec((1, H, S, Dh), lambda b: (b, 0, 0, 0)),
        ],
        out_specs=(
            pl.BlockSpec((1, H, L, Dh), lambda b: (b, 0, 0, 0)),
            pl.BlockSpec((1, L, S), lambda b: (b, 0, 0)),
        ),
        compiler_params=pltpu.CompilerParams(dimension_semantics=("parallel",)),
        cost_estimate=cost,
    )(qh, kh, vh)

    # ---- merge heads + output projection ----
    merged = ctx.transpose(2, 0, 1, 3).reshape(L * N, E)
    out = linear(merged, out_proj_w, out_proj_b, out_dtype=jnp.float32).reshape(L, N, E)
    return out, attn_w


# ---------------------------------------------------------------------------
# Pure-JAX f32 reference (for a loose numerical sanity check).
# ---------------------------------------------------------------------------
def _reference_mha(query, key, value, in_proj_w, in_proj_b,
                   out_proj_w, out_proj_b, num_heads):
    L, N, E = query.shape
    S = key.shape[0]
    H = num_heads
    Dh = E // H
    q = query @ in_proj_w[:E].T + in_proj_b[:E]
    k = key @ in_proj_w[E:2 * E].T + in_proj_b[E:2 * E]
    v = value @ in_proj_w[2 * E:].T + in_proj_b[2 * E:]
    qh = q.reshape(L, N, H, Dh).transpose(1, 2, 0, 3)
    kh = k.reshape(S, N, H, Dh).transpose(1, 2, 0, 3)
    vh = v.reshape(S, N, H, Dh).transpose(1, 2, 0, 3)
    s = jnp.einsum("nhld,nhsd->nhls", qh, kh) / math.sqrt(Dh)
    p = jax.nn.softmax(s, axis=-1)
    ctx = jnp.einsum("nhls,nhsd->nhld", p, vh)
    out = ctx.transpose(2, 0, 1, 3).reshape(L, N, E) @ out_proj_w.T + out_proj_b
    return out, jnp.mean(p, axis=1)


if __name__ == "__main__":
    # Small shapes consistent with the module (embed_dim scaled down from 3072; num_heads=3).
    L, S, N, H, E = 8, 8, 2, 3, 96

    root = jax.random.PRNGKey(0)
    k_q, k_k, k_v, k_wi, k_bi, k_wo, k_bo = jax.random.split(root, 7)

    query = jax.random.normal(k_q, (L, N, E), dtype=jnp.float32)
    key_t = jax.random.normal(k_k, (S, N, E), dtype=jnp.float32)
    value = jax.random.normal(k_v, (S, N, E), dtype=jnp.float32)

    # Parameter shapes follow nn.MultiheadAttention:
    #   in_proj_weight (3E, E), in_proj_bias (3E,), out_proj.weight (E, E), out_proj.bias (E,)
    in_proj_w = jax.random.normal(k_wi, (3 * E, E), jnp.float32) * (1.0 / math.sqrt(E))
    in_proj_b = jax.random.normal(k_bi, (3 * E,), jnp.float32) * 0.01
    out_proj_w = jax.random.normal(k_wo, (E, E), jnp.float32) * (1.0 / math.sqrt(E))
    out_proj_b = jax.random.normal(k_bo, (E,), jnp.float32) * 0.01

    params = (in_proj_w, in_proj_b, out_proj_w, out_proj_b, H)

    # 1) generic cross-attention path (distinct q / k / v)
    x1, w1 = multihead_attention(query, key_t, value, *params)
    # 2) key-is-value path (fused K/V in-projection)
    x2, w2 = multihead_attention(query, key_t, key_t, *params)
    # 3) self-attention path (single fused (M, 3E) in-projection)
    x3, w3 = multihead_attention(query, query, query, *params)
    jax.block_until_ready((x1, w1, x2, w2, x3, w3))

    assert x1.shape == (L, N, E) and w1.shape == (N, L, S)
    assert x2.shape == (L, N, E) and w2.shape == (N, L, S)
    assert x3.shape == (L, N, E) and w3.shape == (N, L, S)

    # Loose numeric check vs pure-JAX f32 reference (kernel uses bf16 MXU operands).
    for (xo, wo), (qq, kk, vv) in [
        ((x1, w1), (query, key_t, value)),
        ((x2, w2), (query, key_t, key_t)),
        ((x3, w3), (query, query, query)),
    ]:
        rx, rw = _reference_mha(qq, kk, vv, *params)
        np.testing.assert_allclose(np.asarray(xo), np.asarray(rx), atol=2e-1, rtol=2e-1)
        np.testing.assert_allclose(np.asarray(wo), np.asarray(rw), atol=5e-2, rtol=5e-2)

    print("KERNEL_OK")
</pallas_src>

<mosaic_0001>
module attributes {stable_mosaic.version = 11 : i64} {
  func.func @_linear_kernel(%arg0: i32, %arg1: i32, %arg2: i32, %arg3: memref<16x96xbf16, #tpu.memory_space<vmem>>, %arg4: memref<96x96xbf16, #tpu.memory_space<vmem>>, %arg5: memref<1x96xf32, #tpu.memory_space<vmem>>, %arg6: memref<16x96xbf16, #tpu.memory_space<vmem>>, %arg7: memref<16x96xf32, #tpu.memory_space<vmem>>) attributes {dimension_semantics = [#tpu.dimension_semantics<parallel>, #tpu.dimension_semantics<parallel>, #tpu.dimension_semantics<arbitrary>], iteration_bounds = array<i64: 1, 1, 1>, scalar_prefetch = 0 : i64, scratch_operands = 1 : i64, tpu.core_type = #tpu.core_type<tc>, window_params = [{transform_indices = @transform_0, window_bounds = array<i64: 16, 96>}, {transform_indices = @transform_1, window_bounds = array<i64: 96, 96>}, {transform_indices = @transform_2, window_bounds = array<i64: 1, 96>}, {transform_indices = @transform_3, window_bounds = array<i64: 16, 96>}]} {
    %c0_i32 = arith.constant 0 : i32
    %0 = arith.cmpi eq, %arg2, %c0_i32 : i32
    %1 = arith.extui %0 : i1 to i32
    %c0_i32_0 = arith.constant 0 : i32
    %2 = arith.cmpi ne, %1, %c0_i32_0 : i32
    scf.if %2 {
      %cst_10 = arith.constant 0.000000e+00 : f32
      %12 = vector.broadcast %cst_10 : f32 to vector<16x96xf32>
      %c0_11 = arith.constant 0 : index
      %c0_12 = arith.constant 0 : index
      %13 = vector.load %arg7[%c0_11, %c0_12] : memref<16x96xf32, #tpu.memory_space<vmem>>, vector<16x96xf32>
      tpu.vector_store %arg7[%c0_11, %c0_12], %12 {strides = array<i32>} : memref<16x96xf32, #tpu.memory_space<vmem>>, vector<16x96xf32>,
    } else {
    }
    %c0 = arith.constant 0 : index
    %c0_1 = arith.constant 0 : index
    %3 = vector.load %arg7[%c0, %c0_1] : memref<16x96xf32, #tpu.memory_space<vmem>>, vector<16x96xf32>
    %c0_2 = arith.constant 0 : index
    %c0_3 = arith.constant 0 : index
    %4 = vector.load %arg3[%c0_2, %c0_3] : memref<16x96xbf16, #tpu.memory_space<vmem>>, vector<16x96xbf16>
    %c0_4 = arith.constant 0 : index
    %c0_5 = arith.constant 0 : index
    %5 = vector.load %arg4[%c0_4, %c0_5] : memref<96x96xbf16, #tpu.memory_space<vmem>>, vector<96x96xbf16>
    %cst = arith.constant dense<0.000000e+00> : vector<16x96xf32>
    %6 = tpu.matmul %4, %5, %cst {dimension_numbers = #tpu.dot_dimension_numbers<[1], [1], [0], [0], [0, 0, 1, 0], [], []>} : vector<16x96xbf16>, vector<96x96xbf16>, vector<16x96xf32> -> vector<16x96xf32>
    %7 = arith.addf %3, %6 : vector<16x96xf32>
    %c0_6 = arith.constant 0 : index
    %c0_7 = arith.constant 0 : index
    %8 = vector.load %arg7[%c0_6, %c0_7] : memref<16x96xf32, #tpu.memory_space<vmem>>, vector<16x96xf32>
    tpu.vector_store %arg7[%c0_6, %c0_7], %7 {strides = array<i32>} : memref<16x96xf32, #tpu.memory_space<vmem>>, vector<16x96xf32>,
    %c0_i32_8 = arith.constant 0 : i32
    %9 = arith.cmpi eq, %arg2, %c0_i32_8 : i32
    %10 = arith.extui %9 : i1 to i32
    %c0_i32_9 = arith.constant 0 : i32
    %11 = arith.cmpi ne, %10, %c0_i32_9 : i32
    scf.if %11 {
      %c0_10 = arith.constant 0 : index
      %c0_11 = arith.constant 0 : index
      %12 = vector.load %arg7[%c0_10, %c0_11] : memref<16x96xf32, #tpu.memory_space<vmem>>, vector<16x96xf32>
      %c0_12 = arith.constant 0 : index
      %c0_13 = arith.constant 0 : index
      %13 = vector.load %arg5[%c0_12, %c0_13] : memref<1x96xf32, #tpu.memory_space<vmem>>, vector<1x96xf32>
      %14 = vector.broadcast %13 : vector<1x96xf32> to vector<16x96xf32>
      %15 = arith.addf %12, %14 : vector<16x96xf32>
      %16 = arith.truncf %15 : vector<16x96xf32> to vector<16x96xbf16>
      %c0_14 = arith.constant 0 : index
      %c0_15 = arith.constant 0 : index
      %17 = vector.load %arg6[%c0_14, %c0_15] : memref<16x96xbf16, #tpu.memory_space<vmem>>, vector<16x96xbf16>
      tpu.vector_store %arg6[%c0_14, %c0_15], %16 {strides = array<i32>} : memref<16x96xbf16, #tpu.memory_space<vmem>>, vector<16x96xbf16>,
    } else {
    }
    return
  }
  func.func @transform_0(%arg0: i32, %arg1: i32, %arg2: i32) -> (i32, i32) {
    %c0_i32 = arith.constant 0 : i32
    return %arg0, %arg2 : i32, i32
  }
  func.func @transform_1(%arg0: i32, %arg1: i32, %arg2: i32) -> (i32, i32) {
    %c0_i32 = arith.constant 0 : i32
    return %arg1, %arg2 : i32, i32
  }
  func.func @transform_2(%arg0: i32, %arg1: i32, %arg2: i32) -> (i32, i32) {
    %c0_i32 = arith.constant 0 : i32
    %c0_i32_0 = arith.constant 0 : i32
    return %c0_i32, %arg1 : i32, i32
  }
  func.func @transform_3(%arg0: i32, %arg1: i32, %arg2: i32) -> (i32, i32) {
    %c0_i32 = arith.constant 0 : i32
    return %arg0, %arg1 : i32, i32
  }
}

</mosaic_0001>

<llo_original>
// kernel: tpu_custom_call.1
$region0: #{tpu_custom_call.1}
  #allocation0 [shape = 'u32[]', space=smem, size = 0x4, offset = 0x4, fixed_abs, tag = 'smem constant byte address 0x4 - core index']
  #allocation1 [shape = 'u32[72,128]{1,0:T(1,128)}', space=vmem, size = 0x9000, scoped, tag = 'internal scratch']
  #allocation2 [shape = 'f32[16,96]{1,0:T(8,128)}', space=vmem, size = 0x2000, scoped, tag = 'scratch operand']
  %s0 = inlined_call_operand.hbm [shape: bf16[16,96], index: 0, kind: input, shape index: {}]
  %s1 = inlined_call_operand.hbm [shape: bf16[96,96], index: 1, kind: input, shape index: {}]
  %s2 = inlined_call_operand.vmem [shape: f32[1,96], index: 2, kind: input, shape index: {}]
  %s3 = inlined_call_operand.hbm [shape: bf16[16,96], index: 3, kind: output, shape index: {}]
  %s4 = sld [smem:[#allocation0]]
  $region38: #{tpu_custom_call.1} parent=0
    _
  %s6 = ssub.s32 1, %s4
  %s7 = scalar_select 0, %s6, %s4
  $region1: #{tpu_custom_call.1} parent=0
    #allocation3 [shape = 'u8[4096]{0}', space=vmem, size = 0x1000, scoped, tag = 'input window, operand 0, single buffered']
    #allocation4 [shape = 's32[1]{0}', space=sflag, size = 0x4, scoped, tag = 'scoped memory for tpu_custom_call.1']
    #allocation5 [shape = 's32[1]{0}', space=sflag, size = 0x4, scoped, tag = 'scoped memory for tpu_custom_call.1']
    #allocation6 [shape = 'u8[24576]{0}', space=vmem, size = 0x6000, scoped, tag = 'input window, operand 1, single buffered']
    #allocation7 [shape = 's32[1]{0}', space=sflag, size = 0x4, scoped, tag = 'scoped memory for tpu_custom_call.1']
    #allocation8 [shape = 'u8[4096]{0}', space=vmem, size = 0x1000, scoped, tag = 'output window, operand 0, single buffered']
    %8 = vsyncpa [#allocation4], 0
    %9 = vsyncpa [#allocation7], 0
    %10 = vsyncpa [#allocation5], 0
    // Predicated region
    $region2: #{tpu_custom_call.1} parent=1 // pred_check
      _
    $region3: #{tpu_custom_call.1} parent=1 // pred_check_branch
      %12 = sbr.rel (0) target = $region5
    $region4: #{tpu_custom_call.1} parent=1 // pred_region
      %14 = vsyncadd [#allocation4], 0
      %s15 = sshll.u32 %s0, 4
      %s16 = int_to_ptr.hbm [resolvable:$true] %s15
      %s17 = sshll.u32 [#allocation3], 4
      %s18 = int_to_ptr.vmem [resolvable:$true] %s17
      %23 = dma.hbm_to_vmem [thread:$0]  %s16, 128, %s18, [#allocation4], 64, 64, 4
    $region5: #{tpu_custom_call.1} parent=1 // pred_fallthru
      _
    // Predicated region
    $region6: #{tpu_custom_call.1} parent=1 // pred_check
      _
    $region7: #{tpu_custom_call.1} parent=1 // pred_check_branch
      %25 = sbr.rel (0) target = $region9
    $region8: #{tpu_custom_call.1} parent=1 // pred_region
      %27 = vsyncadd [#allocation7], 0
      %s28 = sshll.u32 %s1, 4
      %s29 = int_to_ptr.hbm [resolvable:$true] %s28
      %s30 = sshll.u32 [#allocation6], 4
      %s31 = int_to_ptr.vmem [resolvable:$true] %s30
      %36 = dma.hbm_to_vmem [thread:$0]  %s29, 768, %s31, [#allocation7], 64, 64, 4
    $region9: #{tpu_custom_call.1} parent=1 // pred_fallthru
      _
    // Predicated region
    $region10: #{tpu_custom_call.1} parent=1 // pred_check
      _
    $region11: #{tpu_custom_call.1} parent=1 // pred_check_branch
      %38 = sbr.rel (0) target = $region13
    $region12: #{tpu_custom_call.1} parent=1 // pred_region
      _
    $region13: #{tpu_custom_call.1} parent=1 // pred_fallthru
      _
    // Predicated region
    $region14: #{tpu_custom_call.1} parent=1 // pred_check
      _
    $region15: #{tpu_custom_call.1} parent=1 // pred_check_branch
      %40 = sbr.rel (0) target = $region17
    $region16: #{tpu_custom_call.1} parent=1 // pred_region
      %42 = dma.done [#allocation4], 128
    $region17: #{tpu_custom_call.1} parent=1 // pred_fallthru
      _
    // Predicated region
    $region18: #{tpu_custom_call.1} parent=1 // pred_check
      _
    $region19: #{tpu_custom_call.1} parent=1 // pred_check_branch
      %44 = sbr.rel (0) target = $region21
    $region20: #{tpu_custom_call.1} parent=1 // pred_region
      %46 = dma.done [#allocation7], 768
    $region21: #{tpu_custom_call.1} parent=1 // pred_fallthru
      _
    %p48 = scmp.eq.s32.totalorder 0, 0
    // Predicated region
    $region22: #{tpu_custom_call.1} parent=1 // pred_check
      %p49 = pneg %p48
    $region23: #{tpu_custom_call.1} parent=1 // pred_check_branch
      %51 = sbr.rel (%p49) target = $region25
    $region24: #{tpu_custom_call.1} parent=1 // pred_region
      %vm52 = vcmask 785408
      %53 = vst.msk [vmem:[#allocation2] sm:$0xff] %vm52, 0.0
      %54 = vst.msk [vmem:[#allocation2 + $0x8] sm:$0xff] %vm52, 0.0
    $region25: #{tpu_custom_call.1} parent=1 // pred_fallthru
      _
    %v55 = vld [vmem:[#allocation2] sm:$0xff]
    %v56 = vld [vmem:[#allocation2 + $0x8] sm:$0xff]
    %v57 = vld [vmem:[#allocation3] sm:$0xf]
    %v58 = vld [vmem:[#allocation3 + $0x4] sm:$0xf]
    %v59 = vld [vmem:[#allocation6] sm:$0xf]
    %v60 = vld [vmem:[#allocation6 + $0x4] sm:$0xf]
    %v61 = vld [vmem:[#allocation6 + $0x8] sm:$0xf]
    %v62 = vld [vmem:[#allocation6 + $0xc] sm:$0xf]
    %v63 = vld [vmem:[#allocation6 + $0x10] sm:$0xf]
    %v64 = vld [vmem:[#allocation6 + $0x14] sm:$0xf]
    %v65 = vld [vmem:[#allocation6 + $0x18] sm:$0xf]
    %v66 = vld [vmem:[#allocation6 + $0x1c] sm:$0xf]
    %v67 = vld [vmem:[#allocation6 + $0x20] sm:$0xf]
    %v68 = vld [vmem:[#allocation6 + $0x24] sm:$0xf]
    %v69 = vld [vmem:[#allocation6 + $0x28] sm:$0xf]
    %v70 = vld [vmem:[#allocation6 + $0x2c] sm:$0xf]
    %v73 = vunpack.c.l.b16 %v57
    %v74 = vunpack.c.l.b16 %v58
    %v75 = vpack.c.b16 %v74, %v73
    %v88 = vunpack.c.l.b16 %v59
    %v89 = vunpack.c.l.b16 %v60
    %v90 = vunpack.c.l.b16 %v61
    %v91 = vunpack.c.l.b16 %v62
    %v92 = vunpack.c.l.b16 %v63
    %v93 = vunpack.c.l.b16 %v64
    %v94 = vunpack.c.l.b16 %v65
    %v95 = vunpack.c.l.b16 %v66
    %v96 = vunpack.c.l.b16 %v67
    %v97 = vunpack.c.l.b16 %v68
    %v98 = vunpack.c.l.b16 %v69
    %v99 = vunpack.c.l.b16 %v70
    %v100 = vpack.c.b16 %v89, %v88
    %v101 = vpack.c.b16 %v91, %v90
    %v102 = vpack.c.b16 %v93, %v92
    %v103 = vpack.c.b16 %v95, %v94
    %v104 = vpack.c.b16 %v97, %v96
    %v105 = vpack.c.b16 %v99, %v98
    %vm106 = vcmask 785408
    %v108 = vsel %vm106, %v75, 0
    %v111 = vsel %vm106, %v100, 0
    %v114 = vsel %vm106, %v101, 0
    %v117 = vsel %vm106, %v102, 0
    %v120 = vsel %vm106, %v103, 0
    %v123 = vsel %vm106, %v104, 0
    %v126 = vsel %vm106, %v105, 0
    %128 = vmatpush.bf16.xpose.msra.mxu0 0
    %129 = vmatpush.bf16.xpose.msra.mxu0 0
    %130 = vmatpush.bf16.xpose.msra.mxu0 %v126
    %131 = vmatpush.bf16.xpose.msra.mxu0 %v123
    %132 = vmatpush.bf16.xpose.msra.mxu0 %v120
    %133 = vmatpush.bf16.xpose.msra.mxu0 %v117
    %134 = vmatpush.bf16.xpose.msra.mxu0 %v114
    %135 = vmatpush.bf16.xpose.msra.mxu0 %v111
    %136 = vmatmul.bf16.gmra.mxu0 %v108
    %v137 = vpop.f32.mrf.mxu0
    %v138 = vadd.f32 0.0, %v137
    %v139 = vpop.f32.mrf.mxu0
    %v140 = vadd.f32 0.0, %v139
    %141 = vdwg.mxu0
    %v142 = vadd.f32 %v55, %v138
    %v143 = vadd.f32 %v56, %v140
    %144 = vst.msk [vmem:[#allocation2] sm:$0xff] %vm106, %v142
    %145 = vst.msk [vmem:[#allocation2 + $0x8] sm:$0xff] %vm106, %v143
    // Predicated region
    $region26: #{tpu_custom_call.1} parent=1 // pred_check
      %p146 = pneg %p48
    $region27: #{tpu_custom_call.1} parent=1 // pred_check_branch
      %148 = sbr.rel (%p146) target = $region29
    $region28: #{tpu_custom_call.1} parent=1 // pred_region
      %v149 = vld [vmem:[#allocation2] sm:$0xff]
      %v150 = vld [vmem:[#allocation2 + $0x8] sm:$0xff]
      %v151 = vld [vmem:[%s2] sm:$0x1]
      %v153 = vperm.slane %v151, 0
      %v155 = vadd.f32 %v149, %v153
      %v156 = vadd.f32 %v150, %v153
      %v157 = vpack.c.bf16 %v155, %v155
      %v158 = vpack.c.bf16 %v156, %v156
      %vm159 = vcmask 781312
      %160 = vst.msk [vmem:[#allocation8] sm:$0xf] %vm159, %v157
      %161 = vst.msk [vmem:[#allocation8 + $0x4] sm:$0xf] %vm159, %v158
    $region29: #{tpu_custom_call.1} parent=1 // pred_fallthru
      _
    // Predicated region
    $region30: #{tpu_custom_call.1} parent=1 // pred_check
      _
    $region31: #{tpu_custom_call.1} parent=1 // pred_check_branch
      %163 = sbr.rel (0) target = $region33
    $region32: #{tpu_custom_call.1} parent=1 // pred_region
      %165 = vsyncadd [#allocation5], 0
      %s166 = sshll.u32 [#allocation8], 4
      %s167 = int_to_ptr.vmem [resolvable:$true] %s166
      %s168 = sshll.u32 %s3, 4
      %s169 = int_to_ptr.hbm [resolvable:$true] %s168
      %174 = dma.vmem_to_hbm [thread:$0]  %s167, 128, %s169, [#allocation5], 64, 64, 4
    $region33: #{tpu_custom_call.1} parent=1 // pred_fallthru
      _
    // Predicated region
    $region34: #{tpu_custom_call.1} parent=1 // pred_check
      _
    $region35: #{tpu_custom_call.1} parent=1 // pred_check_branch
      %176 = sbr.rel (0) target = $region37
    $region36: #{tpu_custom_call.1} parent=1 // pred_region
      %178 = dma.done [#allocation5], 128
    $region37: #{tpu_custom_call.1} parent=1 // pred_fallthru
      _
    %179 = vsyncpa [#allocation4], 1
    %180 = vsyncpa [#allocation7], 1
    %181 = vsyncpa [#allocation5], 1

</llo_original>
